<compile_context>
chip_gen: v7x
topology: tpu7x:2x2x1
jax: 0.10.0
libtpu: 0.0.40
codegen_flags: <defaults>
</compile_context>

<pallas_src>
import functools

import jax
import jax.numpy as jnp
import numpy as np
from jax import lax
from jax.experimental import pallas as pl
from jax.experimental.pallas import tpu as pltpu


def _choose_tm(m: int) -> int:
    """Query-tile size.

    Full point set for small M; otherwise a multiple of 128 sized so that
    ~5 live (M, TM) 4-byte temporaries stay well under the smallest default
    scoped VMEM (16 MiB on v5e, 32 MiB on v6e/v7x; 64 MiB physical on v7x).
    """
    if m <= 512:
        return m
    budget = 8 * 1024 * 1024                 # bytes for the big (M, TM) tiles
    tm = budget // (20 * m)                  # ~5 tiles * 4 bytes each
    tm = max(128, (tm // 128) * 128)
    return min(tm, 512)


def _knn_kernel(q_ref, k_ref, idx_ref, *, k: int, idx_bits: int,
                use_bf16: bool):
    """One (point-set, query-tile) grid step.

    q_ref  : (1, TM, D) f32  query slab        (VMEM)
    k_ref  : (1, M,  D) f32  full key set      (VMEM)
    idx_ref: (1, k,  TM) i32 neighbour indices (VMEM); k on sublanes,
             queries on lanes -> every store is a full-width lane row.
    """
    q = q_ref[0]                                        # (TM, D)
    keys = k_ref[0]                                     # (M,  D)
    m = keys.shape[0]

    # Key squared norms.  The query-row norm is a per-query constant and is
    # dropped entirely -- it cannot change that query's argmin ordering.
    kn = jnp.sum(keys * keys, axis=-1, keepdims=True)   # (M, 1)

    if use_bf16:
        qm, km = q.astype(jnp.bfloat16), keys.astype(jnp.bfloat16)
    else:
        qm, km = q, keys
    gram = lax.dot_general(km, qm, (((1,), (1,)), ((), ())),
                           preferred_element_type=jnp.float32)  # (M, TM) MXU
    dist = kn - 2.0 * gram                                      # (M, TM)

    # Pack (distance, key index) into one monotone int32 sort key:
    # f32 -> order-preserving int32, clear the low idx_bits bits, OR in the
    # key index.  A single cross-sublane min per round then yields both the
    # winning distance bucket and its index (smallest index on near-ties).
    bits = pltpu.bitcast(dist, jnp.int32)
    okey = jnp.where(bits >= 0, bits, bits ^ jnp.int32(0x7FFFFFFF))
    hi_mask = jnp.int32(-(1 << idx_bits))
    lo_mask = jnp.int32((1 << idx_bits) - 1)
    kidx = lax.broadcasted_iota(jnp.int32, (m, 1), 0)           # (M, 1)
    comb = (okey & hi_mask) | kidx                              # (M, TM)
    sentinel = jnp.int32(0x7FFFFFFF)

    def pick(kk, comb, mask_out=True):
        best = jnp.min(comb, axis=0, keepdims=True)             # (1, TM) XLU
        idx_ref[0, pl.ds(kk, 1), :] = best & lo_mask            # lane-dense
        if mask_out:
            comb = jnp.where(comb == best, sentinel, comb)
        return comb

    if k <= 8:
        for kk in range(k):                                     # small k: unroll
            comb = pick(kk, comb, mask_out=(kk + 1 < k))
    else:
        lax.fori_loop(0, k, pick, comb)                         # bounds vreg use


def knn_indices_pallas(x: jax.Array, k: int) -> jax.Array:
    """x: (N, M, D) float32 -> (N, M, k) int32 indices of k nearest points."""
    n, m, d = x.shape
    if k > m:
        raise ValueError(f"k={k} must be <= number of points M={m}")
    tm = _choose_tm(m)
    n_q = pl.cdiv(m, tm)
    idx_bits = max(1, (m - 1).bit_length())
    kernel = functools.partial(_knn_kernel, k=k, idx_bits=idx_bits,
                               use_bf16=(d >= 256))
    out = pl.pallas_call(
        kernel,
        out_shape=jax.ShapeDtypeStruct((n, k, m), jnp.int32),
        grid_spec=pltpu.PrefetchScalarGridSpec(
            num_scalar_prefetch=0,
            grid=(n, n_q),
            in_specs=[
                pl.BlockSpec((1, tm, d), lambda i, j: (i, j, 0)),   # queries
                pl.BlockSpec((1, m, d), lambda i, j: (i, 0, 0)),    # keys
            ],
            out_specs=pl.BlockSpec((1, k, tm), lambda i, j: (i, 0, j)),
        ),
        compiler_params=pltpu.CompilerParams(
            dimension_semantics=("parallel", "parallel"),
            vmem_limit_bytes=32 * 1024 * 1024,
        ),
    )(x, x)
    return jnp.swapaxes(out, 1, 2)                                  # (N, M, k)


def knn_graphE(x: jax.Array, k: int, istrain: bool = False):
    """JAX/Pallas port of knn_graphE.

    Returns (src, dst) flattened edge-endpoint arrays (global node ids),
    plus the raw (N, M, k) neighbour-index tensor.
    """
    if x.ndim == 2:
        x = x[None, ...]
    n_samples, n_points, _ = x.shape

    k_indices = knn_indices_pallas(x.astype(jnp.float32), k)       # (N, M, k)
    # TODO(synk): istrain random top-1.5k subsampling depends on host-side
    #             numpy RNG state; only the eval (k smallest) path is ported.

    dst = k_indices                                                # (N, M, k)
    src = jnp.zeros_like(dst) + jnp.arange(
        n_points, dtype=jnp.int32).reshape(1, -1, 1)
    per_sample_offset = (jnp.arange(n_samples, dtype=jnp.int32)
                         * n_points).reshape(-1, 1, 1)
    dst = (dst + per_sample_offset).reshape(-1)
    src = (src + per_sample_offset).reshape(-1)
    # TODO(synk): DGLGraph / scipy.sparse.csr_matrix construction is host-side
    #             graph bookkeeping with no TPU-kernel equivalent.
    return src, dst, k_indices


class KNNGraphE:
    def __init__(self, k: int):
        self.k = k

    def __call__(self, x, istrain: bool = False):
        return knn_graphE(x, self.k, istrain)


if __name__ == "__main__":
    key = jax.random.PRNGKey(0)
    N, M, D, K = 2, 16, 8, 4
    x = jax.random.normal(key, (N, M, D), dtype=jnp.float32)

    module = KNNGraphE(K)
    src, dst, k_idx = module(x)
    jax.block_until_ready((src, dst, k_idx))

    # Tie-robust correctness check against a pure-JAX reference: compare the
    # gathered true distances of the selected neighbours.
    x2 = jnp.sum(x * x, axis=-1, keepdims=True)
    dist_ref = x2 + jnp.swapaxes(x2, -1, -2) - 2.0 * jnp.einsum(
        "nmd,npd->nmp", x, x)
    _, ref_idx = lax.top_k(-dist_ref, K)                           # (N, M, K)
    d_kernel = jnp.take_along_axis(dist_ref, k_idx, axis=-1)
    d_ref = jnp.take_along_axis(dist_ref, ref_idx, axis=-1)
    assert src.shape == (N * M * K,) and dst.shape == (N * M * K,)
    assert np.allclose(np.asarray(d_kernel), np.asarray(d_ref), atol=1e-4)

    print("KERNEL_OK")
</pallas_src>

<mosaic_0001>
module attributes {stable_mosaic.version = 11 : i64} {
  func.func @_knn_kernel(%arg0: i32, %arg1: i32, %arg2: memref<1x16x8xf32, #tpu.memory_space<vmem>>, %arg3: memref<1x16x8xf32, #tpu.memory_space<vmem>>, %arg4: memref<1x4x16xi32, #tpu.memory_space<vmem>>) attributes {dimension_semantics = [#tpu.dimension_semantics<parallel>, #tpu.dimension_semantics<parallel>], iteration_bounds = array<i64: 2, 1>, scalar_prefetch = 0 : i64, scratch_operands = 0 : i64, tpu.core_type = #tpu.core_type<tc>, window_params = [{transform_indices = @transform_0, window_bounds = array<i64: 1, 16, 8>}, {transform_indices = @transform_1, window_bounds = array<i64: 1, 16, 8>}, {transform_indices = @transform_2, window_bounds = array<i64: 1, 4, 16>}]} {
    %c0 = arith.constant 0 : index
    %c0_0 = arith.constant 0 : index
    %c0_1 = arith.constant 0 : index
    %0 = vector.load %arg2[%c0, %c0_0, %c0_1] : memref<1x16x8xf32, #tpu.memory_space<vmem>>, vector<1x16x8xf32>
    %1 = vector.shape_cast %0 : vector<1x16x8xf32> to vector<16x8xf32>
    %c0_2 = arith.constant 0 : index
    %c0_3 = arith.constant 0 : index
    %c0_4 = arith.constant 0 : index
    %2 = vector.load %arg3[%c0_2, %c0_3, %c0_4] : memref<1x16x8xf32, #tpu.memory_space<vmem>>, vector<1x16x8xf32>
    %3 = vector.shape_cast %2 : vector<1x16x8xf32> to vector<16x8xf32>
    %4 = arith.mulf %3, %3 : vector<16x8xf32>
    %cst = arith.constant dense<0.000000e+00> : vector<16xf32>
    %5 = vector.multi_reduction <add>, %4, %cst [1] : vector<16x8xf32> to vector<16xf32>
    %6 = vector.shape_cast %5 : vector<16xf32> to vector<16x1xf32>
    %cst_5 = arith.constant dense<0.000000e+00> : vector<16x16xf32>
    %7 = tpu.matmul %3, %1, %cst_5 {dimension_numbers = #tpu.dot_dimension_numbers<[1], [1], [0], [0], [0, 0, 1, 0], [], []>} : vector<16x8xf32>, vector<16x8xf32>, vector<16x16xf32> -> vector<16x16xf32>
    %cst_6 = arith.constant 2.000000e+00 : f32
    %8 = vector.broadcast %cst_6 : f32 to vector<16x16xf32>
    %9 = arith.mulf %8, %7 : vector<16x16xf32>
    %10 = vector.broadcast %6 : vector<16x1xf32> to vector<16x16xf32>
    %11 = arith.subf %10, %9 : vector<16x16xf32>
    %12 = tpu.bitcast %11 : vector<16x16xf32> -> vector<16x16xi32>
    %c0_i32 = arith.constant 0 : i32
    %13 = vector.broadcast %c0_i32 : i32 to vector<16x16xi32>
    %14 = arith.cmpi sge, %12, %13 : vector<16x16xi32>
    %c2147483647_i32 = arith.constant 2147483647 : i32
    %15 = vector.broadcast %c2147483647_i32 : i32 to vector<16x16xi32>
    %16 = arith.xori %12, %15 : vector<16x16xi32>
    %17 = arith.select %14, %12, %16 : vector<16x16xi1>, vector<16x16xi32>
    %18 = tpu.iota {dimensions = array<i32: 0>} : vector<16x1xi32>
    %c-16_i32 = arith.constant -16 : i32
    %19 = vector.broadcast %c-16_i32 : i32 to vector<16x16xi32>
    %20 = arith.andi %17, %19 : vector<16x16xi32>
    %21 = vector.broadcast %18 : vector<16x1xi32> to vector<16x16xi32>
    %22 = arith.ori %20, %21 : vector<16x16xi32>
    %cst_7 = arith.constant dense<2147483647> : vector<16xi32>
    %23 = vector.multi_reduction <minsi>, %22, %cst_7 [0] : vector<16x16xi32> to vector<16xi32>
    %24 = vector.shape_cast %23 : vector<16xi32> to vector<1x16xi32>
    %c15_i32 = arith.constant 15 : i32
    %25 = vector.broadcast %c15_i32 : i32 to vector<1x16xi32>
    %26 = arith.andi %24, %25 : vector<1x16xi32>
    %c0_8 = arith.constant 0 : index
    %c0_9 = arith.constant 0 : index
    %c0_10 = arith.constant 0 : index
    %27 = vector.load %arg4[%c0_8, %c0_9, %c0_10] : memref<1x4x16xi32, #tpu.memory_space<vmem>>, vector<1x1x16xi32>
    %28 = vector.shape_cast %27 : vector<1x1x16xi32> to vector<1x16xi32>
    %29 = vector.shape_cast %26 : vector<1x16xi32> to vector<1x1x16xi32>
    tpu.vector_store %arg4[%c0_8, %c0_9, %c0_10], %29 {strides = array<i32>} : memref<1x4x16xi32, #tpu.memory_space<vmem>>, vector<1x1x16xi32>,
    %30 = vector.broadcast %24 : vector<1x16xi32> to vector<16x16xi32>
    %31 = arith.cmpi eq, %22, %30 : vector<16x16xi32>
    %c2147483647_i32_11 = arith.constant 2147483647 : i32
    %32 = vector.broadcast %c2147483647_i32_11 : i32 to vector<16x16xi32>
    %33 = arith.select %31, %32, %22 : vector<16x16xi1>, vector<16x16xi32>
    %cst_12 = arith.constant dense<2147483647> : vector<16xi32>
    %34 = vector.multi_reduction <minsi>, %33, %cst_12 [0] : vector<16x16xi32> to vector<16xi32>
    %35 = vector.shape_cast %34 : vector<16xi32> to vector<1x16xi32>
    %c15_i32_13 = arith.constant 15 : i32
    %36 = vector.broadcast %c15_i32_13 : i32 to vector<1x16xi32>
    %37 = arith.andi %35, %36 : vector<1x16xi32>
    %c0_14 = arith.constant 0 : index
    %c1 = arith.constant 1 : index
    %c0_15 = arith.constant 0 : index
    %38 = vector.load %arg4[%c0_14, %c1, %c0_15] : memref<1x4x16xi32, #tpu.memory_space<vmem>>, vector<1x1x16xi32>
    %39 = vector.shape_cast %38 : vector<1x1x16xi32> to vector<1x16xi32>
    %40 = vector.shape_cast %37 : vector<1x16xi32> to vector<1x1x16xi32>
    tpu.vector_store %arg4[%c0_14, %c1, %c0_15], %40 {strides = array<i32>} : memref<1x4x16xi32, #tpu.memory_space<vmem>>, vector<1x1x16xi32>,
    %41 = vector.broadcast %35 : vector<1x16xi32> to vector<16x16xi32>
    %42 = arith.cmpi eq, %33, %41 : vector<16x16xi32>
    %c2147483647_i32_16 = arith.constant 2147483647 : i32
    %43 = vector.broadcast %c2147483647_i32_16 : i32 to vector<16x16xi32>
    %44 = arith.select %42, %43, %33 : vector<16x16xi1>, vector<16x16xi32>
    %cst_17 = arith.constant dense<2147483647> : vector<16xi32>
    %45 = vector.multi_reduction <minsi>, %44, %cst_17 [0] : vector<16x16xi32> to vector<16xi32>
    %46 = vector.shape_cast %45 : vector<16xi32> to vector<1x16xi32>
    %c15_i32_18 = arith.constant 15 : i32
    %47 = vector.broadcast %c15_i32_18 : i32 to vector<1x16xi32>
    %48 = arith.andi %46, %47 : vector<1x16xi32>
    %c0_19 = arith.constant 0 : index
    %c2 = arith.constant 2 : index
    %c0_20 = arith.constant 0 : index
    %49 = vector.load %arg4[%c0_19, %c2, %c0_20] : memref<1x4x16xi32, #tpu.memory_space<vmem>>, vector<1x1x16xi32>
    %50 = vector.shape_cast %49 : vector<1x1x16xi32> to vector<1x16xi32>
    %51 = vector.shape_cast %48 : vector<1x16xi32> to vector<1x1x16xi32>
    tpu.vector_store %arg4[%c0_19, %c2, %c0_20], %51 {strides = array<i32>} : memref<1x4x16xi32, #tpu.memory_space<vmem>>, vector<1x1x16xi32>,
    %52 = vector.broadcast %46 : vector<1x16xi32> to vector<16x16xi32>
    %53 = arith.cmpi eq, %44, %52 : vector<16x16xi32>
    %c2147483647_i32_21 = arith.constant 2147483647 : i32
    %54 = vector.broadcast %c2147483647_i32_21 : i32 to vector<16x16xi32>
    %55 = arith.select %53, %54, %44 : vector<16x16xi1>, vector<16x16xi32>
    %cst_22 = arith.constant dense<2147483647> : vector<16xi32>
    %56 = vector.multi_reduction <minsi>, %55, %cst_22 [0] : vector<16x16xi32> to vector<16xi32>
    %57 = vector.shape_cast %56 : vector<16xi32> to vector<1x16xi32>
    %c15_i32_23 = arith.constant 15 : i32
    %58 = vector.broadcast %c15_i32_23 : i32 to vector<1x16xi32>
    %59 = arith.andi %57, %58 : vector<1x16xi32>
    %c0_24 = arith.constant 0 : index
    %c3 = arith.constant 3 : index
    %c0_25 = arith.constant 0 : index
    %60 = vector.load %arg4[%c0_24, %c3, %c0_25] : memref<1x4x16xi32, #tpu.memory_space<vmem>>, vector<1x1x16xi32>
    %61 = vector.shape_cast %60 : vector<1x1x16xi32> to vector<1x16xi32>
    %62 = vector.shape_cast %59 : vector<1x16xi32> to vector<1x1x16xi32>
    tpu.vector_store %arg4[%c0_24, %c3, %c0_25], %62 {strides = array<i32>} : memref<1x4x16xi32, #tpu.memory_space<vmem>>, vector<1x1x16xi32>,
    return
  }
  func.func @transform_0(%arg0: i32, %arg1: i32) -> (i32, i32, i32) {
    %c0_i32 = arith.constant 0 : i32
    %c0_i32_0 = arith.constant 0 : i32
    return %arg0, %arg1, %c0_i32 : i32, i32, i32
  }
  func.func @transform_1(%arg0: i32, %arg1: i32) -> (i32, i32, i32) {
    %c0_i32 = arith.constant 0 : i32
    %c0_i32_0 = arith.constant 0 : i32
    %c0_i32_1 = arith.constant 0 : i32
    return %arg0, %c0_i32, %c0_i32_0 : i32, i32, i32
  }
  func.func @transform_2(%arg0: i32, %arg1: i32) -> (i32, i32, i32) {
    %c0_i32 = arith.constant 0 : i32
    %c0_i32_0 = arith.constant 0 : i32
    return %arg0, %c0_i32, %arg1 : i32, i32, i32
  }
}

</mosaic_0001>

<llo_original>
// kernel: tpu_custom_call.1
$region0: #{tpu_custom_call.1}
  #allocation0 [shape = 'u32[]', space=smem, size = 0x4, offset = 0x4, fixed_abs, tag = 'smem constant byte address 0x4 - core index']
  #allocation1 [shape = 'u32[144,128]{1,0:T(1,128)}', space=vmem, size = 0x12000, scoped, tag = 'internal scratch']
  %s0 = inlined_call_operand.vmem [shape: f32[2,16,8], index: 0, kind: input, shape index: {}]
  %s1 = inlined_call_operand.vmem [shape: f32[2,16,8], index: 1, kind: input, shape index: {}]
  %s2 = inlined_call_operand.hbm [shape: s32[2,4,16], index: 2, kind: output, shape index: {}]
  %s3 = sld [smem:[#allocation0]]
  $region41: #{tpu_custom_call.1} parent=0
    _
  %s5 = ssub.s32 1, %s3
  %s6 = scalar_select 0, %s5, %s3
  $region1: #{tpu_custom_call.1} parent=0
    #allocation2 [shape = 'u8[4096]{0}', space=vmem, size = 0x1000, scoped, tag = 'output window, operand 0']
    #allocation3 [shape = 's32[2]{0}', space=sflag, size = 0x8, scoped, tag = 'scoped memory for tpu_custom_call.1']
    %7 = vsyncpa [#allocation3], 0
    %s8 = scalar_lea.sflag [#allocation3], 1
    %9 = vsyncpa %s8, 0
    loop: start=0, step=1, limit=4
    $region2: #{tpu_custom_call.1} parent=1 // loop_pre_header
      _
    $region3: #{tpu_custom_call.1} parent=1 // loop_header
      %s11 = sphi 0, %s15
      %p12 = scmp.ge.s32.totalorder %s11, 4
      %s18 = sphi 0, %s30
      %s19 = sphi 0, %s26
      %s20 = sphi 0, %s18
      %s21 = sphi 0, %s19
      %s22 = sphi 0, %s20
      %s23 = sphi 0, %s21
      %s35 = sphi 0, %s37
      %s38 = sphi 0, %s35
      %s39 = sphi 0, %s38
      %s55 = sphi 0, %s39
      %s61 = sphi 0, %s63
      %s64 = sphi 0, %s61
      %s65 = sphi 0, %s64
      %s81 = sphi 0, %s65
      %s89 = sphi 0, %s91
      %s92 = sphi 0, %s89
      %s93 = sphi 0, %s92
      %s109 = sphi 0, %s93
    $region4: #{tpu_custom_call.1} parent=1 // loop_header_branch
      %14 = sbr.rel (%p12) target = $region8
    $region5: #{tpu_custom_call.1} parent=1 // loop_body
      %s16 = ssub.s32 %s11, 1
      %s17 = ssub.s32 %s11, 2
      %s24 = sadd.s32 1, %s19
      %p25 = scmp.ge.s32.totalorder %s24, 1
      %s26 = scalar_select %p25, 0, %s24
      %s27 = sadd.s32 1, %s18
      %s28 = scalar_select %p25, %s27, %s18
      %p29 = scmp.ge.s32.totalorder %s28, 2
      %s30 = scalar_select %p29, 0, %s28
      %s31 = ssub.s32 %s18, %s30
      %s32 = ssub.s32 %s19, %s26
      %s33 = sor.u32 %s31, %s32
      %p34 = scmp.eq.s32.totalorder %s33, 0
      %s36 = sadd.s32 %s35, 1
      %s37 = scalar_select %p34, %s35, %s36
      %p40 = pneg %p34
      %p41 = scmp.eq.s32.totalorder %s11, 1
      %p42 = por %p40, %p41
      %p43 = scmp.ne.s32.totalorder %s35, %s38
      %p44 = scmp.eq.s32.totalorder %s11, 0
      %p45 = por %p43, %p44
      %p46 = scmp.ne.s32.totalorder %s35, %s38
      %p47 = scmp.eq.s32.totalorder %s16, 1
      %p48 = por %p46, %p47
      %p49 = scmp.ne.s32.totalorder %s38, %s39
      %p50 = scmp.eq.s32.totalorder %s16, 0
      %p51 = por %p49, %p50
      %p52 = scmp.ne.s32.totalorder %s38, %s39
      %p53 = scmp.eq.s32.totalorder %s17, 1
      %p54 = por %p52, %p53
      %p56 = scmp.ne.s32.totalorder %s39, %s55
      %p57 = scmp.eq.s32.totalorder %s17, 0
      %p58 = por %p56, %p57
      %s59 = ssub.s32 %s18, %s30
      %p60 = scmp.eq.s32.totalorder %s59, 0
      %s62 = sadd.s32 %s61, 1
      %s63 = scalar_select %p60, %s61, %s62
      %p66 = pneg %p60
      %p67 = scmp.eq.s32.totalorder %s11, 1
      %p68 = por %p66, %p67
      %p69 = scmp.ne.s32.totalorder %s61, %s64
      %p70 = scmp.eq.s32.totalorder %s11, 0
      %p71 = por %p69, %p70
      %p72 = scmp.ne.s32.totalorder %s61, %s64
      %p73 = scmp.eq.s32.totalorder %s16, 1
      %p74 = por %p72, %p73
      %p75 = scmp.ne.s32.totalorder %s64, %s65
      %p76 = scmp.eq.s32.totalorder %s16, 0
      %p77 = por %p75, %p76
      %p78 = scmp.ne.s32.totalorder %s64, %s65
      %p79 = scmp.eq.s32.totalorder %s17, 1
      %p80 = por %p78, %p79
      %p82 = scmp.ne.s32.totalorder %s65, %s81
      %p83 = scmp.eq.s32.totalorder %s17, 0
      %p84 = por %p82, %p83
      %s85 = ssub.s32 %s18, %s30
      %s86 = ssub.s32 %s19, %s26
      %s87 = sor.u32 %s85, %s86
      %p88 = scmp.eq.s32.totalorder %s87, 0
      %s90 = sadd.s32 %s89, 1
      %s91 = scalar_select %p88, %s89, %s90
      %p94 = pneg %p88
      %p95 = scmp.eq.s32.totalorder %s11, 1
      %p96 = por %p94, %p95
      %p97 = scmp.ne.s32.totalorder %s89, %s92
      %p98 = scmp.eq.s32.totalorder %s11, 0
      %p99 = por %p97, %p98
      %p100 = scmp.ne.s32.totalorder %s89, %s92
      %p101 = scmp.eq.s32.totalorder %s16, 1
      %p102 = por %p100, %p101
      %p103 = scmp.ne.s32.totalorder %s92, %s93
      %p104 = scmp.eq.s32.totalorder %s16, 0
      %p105 = por %p103, %p104
      %p106 = scmp.ne.s32.totalorder %s92, %s93
      %p107 = scmp.eq.s32.totalorder %s17, 1
      %p108 = por %p106, %p107
      %p110 = scmp.ne.s32.totalorder %s93, %s109
      %p111 = scmp.eq.s32.totalorder %s17, 0
      %p112 = por %p110, %p111
      %p113 = scmp.le.s32.totalorder 1, %s11
      %p114 = scmp.lt.s32.totalorder %s11, 3
      %p115 = pnand %p113, %p114
      %p116 = pneg %p115
      // Predicated region
      $region9: #{tpu_custom_call.1} parent=5 // pred_check
        _
      $region10: #{tpu_custom_call.1} parent=5 // pred_check_branch
        %118 = sbr.rel (%p115) target = $region12
      $region11: #{tpu_custom_call.1} parent=5 // pred_region
        %s119 = ssub.s32 %s11, 1
      $region12: #{tpu_custom_call.1} parent=5 // pred_fallthru
        _
      %p120 = scmp.lt.s32.totalorder %s11, 2
      // Predicated region
      $region13: #{tpu_custom_call.1} parent=5 // pred_check
        %p121 = pneg %p120
      $region14: #{tpu_custom_call.1} parent=5 // pred_check_branch
        %123 = sbr.rel (%p121) target = $region16
      $region15: #{tpu_custom_call.1} parent=5 // pred_region
        // Predicated region
        $region17: #{tpu_custom_call.1} parent=15 // pred_check
          %p124 = pneg %p45
        $region18: #{tpu_custom_call.1} parent=15 // pred_check_branch
          %126 = sbr.rel (%p124) target = $region20
        $region19: #{tpu_custom_call.1} parent=15 // pred_region
          %s127 = smul.u32 2, %s19
          %p128 = scmp.lt.s32.totalorder %s18, 1
          %s129 = scalar_select %p128, %s18, 1
          %p130 = scmp.lt.s32.totalorder %s127, 1
          %s131 = scalar_select %p130, %s127, 1
          %s132 = smul.addr %s129, 2
          %s133 = sadd.s32 %s131, %s132
          %s134 = smul.addr %s133, 8
          %s135 = scalar_lea.vmem %s0, %s134
          %s136 = smul.u32 2, %s19
        $region20: #{tpu_custom_call.1} parent=15 // pred_fallthru
          _
        // Predicated region
        $region21: #{tpu_custom_call.1} parent=15 // pred_check
          %p137 = pneg %p71
        $region22: #{tpu_custom_call.1} parent=15 // pred_check_branch
          %139 = sbr.rel (%p137) target = $region24
        $region23: #{tpu_custom_call.1} parent=15 // pred_region
          %p140 = scmp.lt.s32.totalorder %s18, 1
          %s141 = scalar_select %p140, %s18, 1
          %s142 = smul.addr %s141, 2
          %s143 = smul.addr %s142, 8
          %s144 = scalar_lea.vmem %s1, %s143
        $region24: #{tpu_custom_call.1} parent=15 // pred_fallthru
          _
      $region16: #{tpu_custom_call.1} parent=5 // pred_fallthru
        _
      %p145 = scmp.le.s32.totalorder 1, %s11
      %p146 = scmp.lt.s32.totalorder %s11, 3
      %p147 = pnand %p145, %p146
      %p148 = pneg %p147
      // Predicated region
      $region25: #{tpu_custom_call.1} parent=5 // pred_check
        _
      $region26: #{tpu_custom_call.1} parent=5 // pred_check_branch
        %150 = sbr.rel (%p147) target = $region28
      $region27: #{tpu_custom_call.1} parent=5 // pred_region
        %s151 = ssub.s32 %s11, 1
        %s152 = smul.u32 2, %s21
        %p153 = scmp.lt.s32.totalorder %s20, 1
        %s154 = scalar_select %p153, %s20, 1
        %p155 = scmp.lt.s32.totalorder %s152, 1
        %s156 = scalar_select %p155, %s152, 1
        %s157 = smul.addr %s154, 2
        %s158 = sadd.s32 %s156, %s157
        %s159 = smul.addr %s158, 8
        %s160 = scalar_lea.vmem %s0, %s159
        %p161 = pneg %p51
        %p162 = pneg %p48
        %p163 = scmp.lt.s32.totalorder %s20, 1
        %s164 = scalar_select %p163, %s20, 1
        %s165 = smul.addr %s164, 2
        %s166 = smul.addr %s165, 8
        %s167 = scalar_lea.vmem %s1, %s166
        %p168 = pneg %p77
        %p169 = pneg %p74
        %p170 = pneg %p105
        %p171 = pneg %p102
        %s172 = sand.u32 %s92, 1
        %s173 = scalar_lea.sflag [#allocation3], %s172
        %s174 = sand.u32 %s92, 1
        %s175 = smul.addr %s174, 4
        %s176 = scalar_lea.vmem [#allocation2], %s175
        %s177 = smul.u32 2, %s21
        %p178 = scmp.lt.s32.totalorder %s20, 1
        %s179 = scalar_select %p178, %s20, 1
        %p180 = scmp.lt.s32.totalorder %s177, 1
        %s181 = scalar_select %p180, %s177, 1
        %s182 = smul.addr %s179, 2
        %s183 = sadd.s32 %s181, %s182
        %s184 = smul.addr %s183, 8
        %s185 = scalar_lea.vmem %s0, %s184
        %s186 = smul.u32 2, %s21
        %p187 = scmp.lt.s32.totalorder %s20, 1
        %s188 = scalar_select %p187, %s20, 1
        %s189 = smul.addr %s188, 2
        %s190 = smul.addr %s189, 8
        %s191 = scalar_lea.vmem %s1, %s190
        %v192 = vld [vmem:[%s185] sm:$0xff]
        %v193 = vld [vmem:[%s185 + $0x8] sm:$0xff]
        %v194 = vld [vmem:[%s191] sm:$0xff]
        %v195 = vld [vmem:[%s191 + $0x8] sm:$0xff]
        %v196 = vmul.f32 %v194, %v194
        %v197 = vmul.f32 %v195, %v195
        %vm198 = vcmask 64512
        %v199 = vsel %vm198, %v196, 0.0
        %200 = vadd.xlane.f32.xlu0 %v199
        %v201 = vpop.xlane.xlu0 %200
        %v202 = vsel %vm198, %v197, 0.0
        %203 = vadd.xlane.f32.xlu0 %v202
        %v204 = vpop.xlane.xlu0 %203
        %v206 = vsel %vm198, %v194, 0
        %v209 = vsel %vm198, %v195, 0
        %v212 = vsel %vm198, %v192, 0
        %v215 = vsel %vm198, %v193, 0
        %217 = vmatprep.subr.mxu0 0.0
        %218 = vmatpush1.xpose.msra.mxu0 %v212
        %219 = vmatprep.subr.mxu0 0.0
        %220 = vmatpush1.xpose.msra.mxu0 %v215
        %221 = vmatprep.subr.mxu0 0.0
        %222 = vmatpush1.xpose.msra.mxu0 0.0
        %223 = vmatprep.subr.mxu0 0.0
        %224 = vmatpush1.xpose.msra.mxu0 0.0
        %225 = vmatprep.subr.mxu0 0.0
        %226 = vmatpush1.xpose.msra.mxu0 0.0
        %227 = vmatprep.subr.mxu0 0.0
        %228 = vmatpush1.xpose.msra.mxu0 0.0
        %229 = vmatprep.subr.mxu0 0.0
        %230 = vmatpush1.xpose.msra.mxu0 0.0
        %231 = vmatprep.subr.mxu0 0.0
        %232 = vmatpush1.xpose.msra.mxu0 0.0
        %233 = vmatprep.subr.mxu0 0.0
        %234 = vmatpush1.xpose.msra.mxu0 0.0
        %235 = vmatprep.subr.mxu0 0.0
        %236 = vmatpush1.xpose.msra.mxu0 0.0
        %237 = vmatprep.subr.mxu0 0.0
        %238 = vmatpush1.xpose.msra.mxu0 0.0
        %239 = vmatprep.subr.mxu0 0.0
        %240 = vmatpush1.xpose.msra.mxu0 0.0
        %241 = vmatprep.subr.mxu0 0.0
        %242 = vmatpush1.xpose.msra.mxu0 0.0
        %243 = vmatprep.subr.mxu0 0.0
        %244 = vmatpush1.xpose.msra.mxu0 0.0
        %245 = vmatprep.subr.mxu0 0.0
        %246 = vmatpush1.xpose.msra.mxu0 0.0
        %247 = vmatprep.subr.mxu0 0.0
        %248 = vmatpush1.xpose.msra.mxu0 0.0
        %249 = vmatprep.subr.mxu0 0.0
        %250 = vmatpush1.xpose.msra.mxu0 0.0
        %251 = vmatprep.subr.mxu0 0.0
        %252 = vmatpush1.xpose.msra.mxu0 0.0
        %253 = vmatprep.subr.mxu0 0.0
        %254 = vmatpush1.xpose.msra.mxu0 0.0
        %255 = vmatprep.subr.mxu0 0.0
        %256 = vmatpush1.xpose.msra.mxu0 0.0
        %257 = vmatprep.subr.mxu0 0.0
        %258 = vmatpush1.xpose.msra.mxu0 0.0
        %259 = vmatprep.subr.mxu0 0.0
        %260 = vmatpush1.xpose.msra.mxu0 0.0
        %261 = vmatprep.subr.mxu0 0.0
        %262 = vmatpush1.xpose.msra.mxu0 0.0
        %263 = vmatprep.subr.mxu0 0.0
        %264 = vmatpush1.xpose.msra.mxu0 0.0
        %265 = vmatprep.subr.mxu0 0.0
        %266 = vmatpush1.xpose.msra.mxu0 0.0
        %267 = vmatprep.subr.mxu0 0.0
        %268 = vmatpush1.xpose.msra.mxu0 0.0
        %269 = vmatprep.subr.mxu0 0.0
        %270 = vmatpush1.xpose.msra.mxu0 0.0
        %271 = vmatprep.subr.mxu0 0.0
        %272 = vmatpush1.xpose.msra.mxu0 0.0
        %273 = vmatprep.subr.mxu0 0.0
        %274 = vmatpush1.xpose.msra.mxu0 0.0
        %275 = vmatprep.subr.mxu0 0.0
        %276 = vmatpush1.xpose.msra.mxu0 0.0
        %277 = vmatprep.subr.mxu0 0.0
        %278 = vmatpush1.xpose.msra.mxu0 0.0
        %279 = vmatprep.subr.mxu0 0.0
        %280 = vmatpush1.xpose.msra.mxu0 0.0
        %281 = vmatprep.mubr.f32.mxu0 0.0
        %282 = vmatmul.mubr.f32.gmra.mrb[0].mxu0 %v206
        %v283 = vpop.f32.mrb[0].mxu0
        %v284 = vadd.f32 0.0, %v283
        %v285 = vpop.f32.mrb[0].mxu0
        %286 = vmatprep.mubr.f32.mxu0 0.0
        %287 = vmatmul.mubr.f32.gmra.mrb[0].mxu0 %v209
        %v288 = vpop.f32.mrb[0].mxu0
        %v289 = vadd.f32 0.0, %v288
        %v290 = vpop.f32.mrb[0].mxu0
        %291 = vdwg.mxu0
        %v292 = vmul.f32 %v284, 2.0
        %v293 = vmul.f32 %v289, 2.0
        %v294 = vsub.f32 %v201, %v292
        %v295 = vsub.f32 %v204, %v293
        %vm298 = vcmp.ge.s32.totalorder %v294, 0
        %vm299 = vcmp.ge.s32.totalorder %v295, 0
        %v300 = vxor.u32 %v294, 2147483647
        %v301 = vxor.u32 %v295, 2147483647
        %v302 = vsel %vm298, %v294, %v300
        %v303 = vsel %vm299, %v295, %v301
        %v304 = vlaneseq
        %v305 = vshrl.u32 %v304, 7
        %v306 = vadd.s32 %v305, 8
        %v307 = vand.u32 %v302, 4294967280
        %v308 = vand.u32 %v303, 4294967280
        %v309 = vor.u32 %v307, %v305
        %v310 = vor.u32 %v308, %v306
        %vm311 = vcmask 130048
        %v312 = vsel %vm311, %v309, 2147483647
        %v313 = vsel %vm311, %v310, 2147483647
        %vm314 = vcmp.lt.s32.totalorder %v312, %v313
        %v315 = vsel %vm314, %v312, %v313
        %v316 = vrot.slane %v315, 4
        %vm317 = vcmp.lt.s32.totalorder %v315, %v316
        %v318 = vsel %vm317, %v315, %v316
        %v319 = vrot.slane %v318, 2
        %vm320 = vcmp.lt.s32.totalorder %v318, %v319
        %v321 = vsel %vm320, %v318, %v319
        %v322 = vrot.slane %v321, 1
        %vm323 = vcmp.lt.s32.totalorder %v321, %v322
        %v324 = vsel %vm323, %v321, %v322
        %v325 = vand.u32 %v324, 15
        %vm326 = vcmask 122880
        %327 = vst.msk [vmem:[%s176] sm:$0x1] %vm326, %v325
        %vm328 = vcmp.eq.s32.totalorder %v309, %v324
        %vm329 = vcmp.eq.s32.totalorder %v310, %v324
        %v330 = vsel %vm328, 2147483647, %v309
        %v331 = vsel %vm329, 2147483647, %v310
        %v332 = vsel %vm311, %v330, 2147483647
        %v333 = vsel %vm311, %v331, 2147483647
        %vm334 = vcmp.lt.s32.totalorder %v332, %v333
        %v335 = vsel %vm334, %v332, %v333
        %v336 = vrot.slane %v335, 4
        %vm337 = vcmp.lt.s32.totalorder %v335, %v336
        %v338 = vsel %vm337, %v335, %v336
        %v339 = vrot.slane %v338, 2
        %vm340 = vcmp.lt.s32.totalorder %v338, %v339
        %v341 = vsel %vm340, %v338, %v339
        %v342 = vrot.slane %v341, 1
        %vm343 = vcmp.lt.s32.totalorder %v341, %v342
        %v344 = vsel %vm343, %v341, %v342
        %v345 = vand.u32 %v344, 15
        %346 = vst.msk [vmem:[%s176 + $0x1] sm:$0x1] %vm326, %v345
        %vm347 = vcmp.eq.s32.totalorder %v330, %v344
        %vm348 = vcmp.eq.s32.totalorder %v331, %v344
        %v349 = vsel %vm347, 2147483647, %v330
        %v350 = vsel %vm348, 2147483647, %v331
        %v351 = vsel %vm311, %v349, 2147483647
        %v352 = vsel %vm311, %v350, 2147483647
        %vm353 = vcmp.lt.s32.totalorder %v351, %v352
        %v354 = vsel %vm353, %v351, %v352
        %v355 = vrot.slane %v354, 4
        %vm356 = vcmp.lt.s32.totalorder %v354, %v355
        %v357 = vsel %vm356, %v354, %v355
        %v358 = vrot.slane %v357, 2
        %vm359 = vcmp.lt.s32.totalorder %v357, %v358
        %v360 = vsel %vm359, %v357, %v358
        %v361 = vrot.slane %v360, 1
        %vm362 = vcmp.lt.s32.totalorder %v360, %v361
        %v363 = vsel %vm362, %v360, %v361
        %v364 = vand.u32 %v363, 15
        %365 = vst.msk [vmem:[%s176 + $0x2] sm:$0x1] %vm326, %v364
        %vm366 = vcmp.eq.s32.totalorder %v349, %v363
        %vm367 = vcmp.eq.s32.totalorder %v350, %v363
        %v368 = vsel %vm366, 2147483647, %v349
        %v369 = vsel %vm367, 2147483647, %v350
        %v370 = vsel %vm311, %v368, 2147483647
        %v371 = vsel %vm311, %v369, 2147483647
        %vm372 = vcmp.lt.s32.totalorder %v370, %v371
        %v373 = vsel %vm372, %v370, %v371
        %v374 = vrot.slane %v373, 4
        %vm375 = vcmp.lt.s32.totalorder %v373, %v374
        %v376 = vsel %vm375, %v373, %v374
        %v377 = vrot.slane %v376, 2
        %vm378 = vcmp.lt.s32.totalorder %v376, %v377
        %v379 = vsel %vm378, %v376, %v377
        %v380 = vrot.slane %v379, 1
        %vm381 = vcmp.lt.s32.totalorder %v379, %v380
        %v382 = vsel %vm381, %v379, %v380
        %v383 = vand.u32 %v382, 15
        %384 = vst.msk [vmem:[%s176 + $0x3] sm:$0x1] %vm326, %v383
        %s385 = sand.u32 %s92, 1
        %s386 = scalar_lea.sflag [#allocation3], %s385
        %s387 = sand.u32 %s92, 1
        %s388 = smul.addr %s387, 4
        %s389 = scalar_lea.vmem [#allocation2], %s388
        // Predicated region
        $region29: #{tpu_custom_call.1} parent=27 // pred_check
          %p390 = pneg %p102
        $region30: #{tpu_custom_call.1} parent=27 // pred_check_branch
          %392 = sbr.rel (%p390) target = $region32
        $region31: #{tpu_custom_call.1} parent=27 // pred_region
          %s394 = ssub.s32 64, 64
          %395 = vsyncadd %s386, %s394
          %s396 = sadd.s32 %s21, %s20
          %s397 = smul.addr %s396, 64
          %s398 = scalar_lea.hbm %s2, %s397
          %s400 = sshll.u32 %s389, 4
          %s401 = int_to_ptr.vmem [resolvable:$true] %s400
          %403 = dma.vmem_to_hbm [thread:$0]  %s401, 64, %s398, %s386
        $region32: #{tpu_custom_call.1} parent=27 // pred_fallthru
          _
      $region28: #{tpu_custom_call.1} parent=5 // pred_fallthru
        _
      %p404 = scmp.le.s32.totalorder 2, %s11
      // Predicated region
      $region33: #{tpu_custom_call.1} parent=5 // pred_check
        %p405 = pneg %p404
      $region34: #{tpu_custom_call.1} parent=5 // pred_check_branch
        %407 = sbr.rel (%p405) target = $region36
      $region35: #{tpu_custom_call.1} parent=5 // pred_region
        %s408 = ssub.s32 %s11, 2
        // Predicated region
        $region37: #{tpu_custom_call.1} parent=35 // pred_check
          %p409 = pneg %p108
        $region38: #{tpu_custom_call.1} parent=35 // pred_check_branch
          %411 = sbr.rel (%p409) target = $region40
        $region39: #{tpu_custom_call.1} parent=35 // pred_region
          %s412 = sand.u32 %s93, 1
          %s413 = scalar_lea.sflag [#allocation3], %s412
          %s414 = sand.u32 %s93, 1
          %s415 = smul.addr %s414, 4
          %s416 = scalar_lea.vmem [#allocation2], %s415
          %417 = dma.done %s413, 64
        $region40: #{tpu_custom_call.1} parent=35 // pred_fallthru
          _
      $region36: #{tpu_custom_call.1} parent=5 // pred_fallthru
        _
    $region6: #{tpu_custom_call.1} parent=1 // loop_footer
      %s15 = sadd.s32 1, %s11
    $region7: #{tpu_custom_call.1} parent=1 // loop_footer_branch
      %10 = sbr.rel target = $region3
    $region8: #{tpu_custom_call.1} parent=1 // loop_exit
      _
    %418 = vsyncpa [#allocation3], 1
    %s419 = scalar_lea.sflag [#allocation3], 1
    %420 = vsyncpa %s419, 1

</llo_original>
